<compile_context>
chip_gen: v7x
topology: tpu7x:2x2x1
jax: 0.10.0
libtpu: 0.0.40
codegen_flags: <defaults>
</compile_context>

<pallas_src>
import functools

import jax
import jax.numpy as jnp
from jax.experimental import pallas as pl
from jax.experimental.pallas import tpu as pltpu


def _maybe_layernorm(y, gamma_ref, beta_ref, use_layernorm, eps):
    if not use_layernorm:
        return y
    # Single-pass statistics: mean and mean(y*y) are independent reductions
    # (no serialized second pass over (y - mean)**2); rsqrt goes to the EUP.
    mean = jnp.mean(y, axis=-1, keepdims=True)
    var = jnp.mean(y * y, axis=-1, keepdims=True) - mean * mean
    y = (y - mean) * jax.lax.rsqrt(var + eps)
    return y * gamma_ref[...] + beta_ref[...]


def _fused_kernel(ids_ref, t_ref, gamma_ref, beta_ref, o_ref, *,
                  vocab, use_layernorm, eps):
    """Small-vocab path: one exact row-select MXU matmul against the fused
    (V, D) table T = em @ W.T."""
    ids = ids_ref[...]                                       # (TM, 1) int32
    tm = ids.shape[0]
    onehot = (jax.lax.broadcasted_iota(jnp.int32, (tm, vocab), 1) == ids)
    onehot = onehot.astype(t_ref.dtype)                      # exact 0/1 selector
    y = jnp.dot(onehot, t_ref[...],
                preferred_element_type=jnp.float32)          # (TM, D)
    y = _maybe_layernorm(y, gamma_ref, beta_ref, use_layernorm, eps)
    o_ref[...] = y.astype(o_ref.dtype)


def _gather_kernel(ids_ref, em_ref, w_ref, gamma_ref, beta_ref, o_ref, *,
                   use_layernorm, eps):
    """Large-vocab path: real row gather from the VMEM-resident (V, H) table,
    then a single (TM,H)@(H,D) projection (no O(TM*V) one-hot)."""
    ids = ids_ref[...][:, 0]                                 # (TM,) int32
    h = jnp.take(em_ref[...], ids, axis=0)                   # (TM, H)
    y = jnp.dot(h, w_ref[...],
                preferred_element_type=jnp.float32)          # (TM, D)
    y = _maybe_layernorm(y, gamma_ref, beta_ref, use_layernorm, eps)
    o_ref[...] = y.astype(o_ref.dtype)


def _round_up(x, m):
    return (x + m - 1) // m * m


def factorized_embedding(ids, em_table, fc_weight, gamma=None, beta=None, *,
                         layernorm=False, eps=1e-5, tile_m=256,
                         out_dtype=jnp.float32,
                         fuse_table_budget_bytes=8 * 1024 * 1024,
                         vmem_limit_bytes=None):
    """ids: (B, S) int; em_table: (V, H) f32; fc_weight: (D, H) f32
       (same layout as nn.Linear.weight). Returns (B, S, D) in out_dtype."""
    B, S = ids.shape
    V, H = em_table.shape
    D, H2 = fc_weight.shape
    assert H2 == H
    N = B * S

    # --- token tile sizing: big MXU-height tiles, padded grid (no N%tile req)
    tile_m = max(8, min(int(tile_m), _round_up(N, 8)))
    tile_m = _round_up(tile_m, 8)
    n_pad = _round_up(N, tile_m)

    ids_flat = jnp.clip(ids.reshape(-1).astype(jnp.int32), 0, V - 1)
    if n_pad != N:
        ids_flat = jnp.concatenate(
            [ids_flat, jnp.zeros((n_pad - N,), jnp.int32)])
    ids2 = ids_flat.reshape(n_pad, 1)

    if gamma is None:
        gamma = jnp.ones((D,), jnp.float32)
    if beta is None:
        beta = jnp.zeros((D,), jnp.float32)
    gamma2 = gamma.reshape(1, D).astype(jnp.float32)
    beta2 = beta.reshape(1, D).astype(jnp.float32)

    em_f32 = em_table.astype(jnp.float32)
    w_f32 = fc_weight.astype(jnp.float32)

    use_fused = V * D * 4 <= fuse_table_budget_bytes
    if use_fused:
        # Fuse Embedding+Linear once in the wrapper: T[v] = em[v] @ W.T .
        fused_t = em_f32 @ w_f32.T                           # (V, D)
        kernel = functools.partial(_fused_kernel, vocab=V,
                                   use_layernorm=layernorm, eps=eps)
        weight_args = (fused_t,)
        weight_specs = [pl.BlockSpec((V, D), lambda i: (0, 0))]
        weight_bytes = V * D * 4
    else:
        # TODO(synk): for tables too large for VMEM, gather the TM rows from an
        # HBM-resident table with pltpu.make_async_copy + scalar-prefetched ids
        # instead of keeping the whole (V, H) table VMEM-resident.
        kernel = functools.partial(_gather_kernel,
                                   use_layernorm=layernorm, eps=eps)
        weight_args = (em_f32, w_f32.T)
        weight_specs = [pl.BlockSpec((V, H), lambda i: (0, 0)),
                        pl.BlockSpec((H, D), lambda i: (0, 0))]
        weight_bytes = (V * H + H * D) * 4

    # --- scoped-VMEM sizing (grid-invariant weights are double-buffered) ----
    out_itemsize = jnp.dtype(out_dtype).itemsize
    est = (2 * (weight_bytes + 2 * D * 4)              # tables + gamma/beta
           + 2 * tile_m * (4 + D * out_itemsize)       # ids + output tiles
           + (4 << 20))                                # slack
    if vmem_limit_bytes is None and est > (12 << 20):
        vmem_limit_bytes = int(min(est, (127 << 20)))

    out = pl.pallas_call(
        kernel,
        out_shape=jax.ShapeDtypeStruct((n_pad, D), out_dtype),
        grid_spec=pltpu.PrefetchScalarGridSpec(
            num_scalar_prefetch=0,
            grid=(n_pad // tile_m,),
            in_specs=[pl.BlockSpec((tile_m, 1), lambda i: (i, 0))]  # token ids
                     + weight_specs
                     + [pl.BlockSpec((1, D), lambda i: (0, 0)),     # gamma
                        pl.BlockSpec((1, D), lambda i: (0, 0))],    # beta
            out_specs=pl.BlockSpec((tile_m, D), lambda i: (i, 0)),
        ),
        compiler_params=pltpu.CompilerParams(
            dimension_semantics=("parallel",),
            vmem_limit_bytes=vmem_limit_bytes),
    )(ids2, *weight_args, gamma2, beta2)

    return out[:N].reshape(B, S, D)


def _reference(ids, em_table, fc_weight, gamma, beta, layernorm, eps=1e-5):
    h = em_table[ids]                    # (B, S, H)
    y = h @ fc_weight.T                  # (B, S, D)
    if layernorm:
        mean = y.mean(-1, keepdims=True)
        var = ((y - mean) ** 2).mean(-1, keepdims=True)
        y = (y - mean) / jnp.sqrt(var + eps) * gamma + beta
    return y


if __name__ == "__main__":
    # Module hyperparameters (small, consistent with the forward pass).
    num_embeddings = 64      # vocabulary size V
    embedding_dim = 128      # final embedding dim D
    hid_dim = 16             # factored dim H
    padding_idx = 1
    batch, seq = 2, 9        # N = 18 -> exercises the pad-to-tile path

    key = jax.random.PRNGKey(0)
    k_em, k_fc, k_g, k_b, k_ids = jax.random.split(key, 5)

    # Deterministic parameter init (nn.Embedding zeroes the padding row).
    em_table = jax.random.normal(k_em, (num_embeddings, hid_dim),
                                 dtype=jnp.float32)
    em_table = em_table.at[padding_idx].set(0.0)
    fc_weight = jax.random.normal(k_fc, (embedding_dim, hid_dim),
                                  dtype=jnp.float32) / jnp.sqrt(hid_dim)
    gamma = 1.0 + 0.1 * jax.random.normal(k_g, (embedding_dim,),
                                          dtype=jnp.float32)
    beta = 0.1 * jax.random.normal(k_b, (embedding_dim,), dtype=jnp.float32)

    # Example input: token ids (include the padding token).
    ids = jax.random.randint(k_ids, (batch, seq), 0, num_embeddings,
                             dtype=jnp.int32)
    ids = ids.at[0, 0].set(padding_idx)

    ok = True
    for use_ln in (False, True):
        for tm in (256, 8):   # big default tile, and a multi-step padded grid
            out = factorized_embedding(ids, em_table, fc_weight, gamma, beta,
                                       layernorm=use_ln, tile_m=tm)
            out = jax.block_until_ready(out)
            ref = _reference(ids, em_table, fc_weight, gamma, beta, use_ln)
            if out.shape != (batch, seq, embedding_dim):
                ok = False
            if not jnp.allclose(out, ref, atol=1e-4, rtol=1e-4):
                ok = False

    if ok:
        print("KERNEL_OK")
</pallas_src>

<mosaic_0001>
module attributes {stable_mosaic.version = 11 : i64} {
  func.func @_fused_kernel(%arg0: i32, %arg1: memref<24x1xi32, #tpu.memory_space<vmem>>, %arg2: memref<64x128xf32, #tpu.memory_space<vmem>>, %arg3: memref<1x128xf32, #tpu.memory_space<vmem>>, %arg4: memref<1x128xf32, #tpu.memory_space<vmem>>, %arg5: memref<24x128xf32, #tpu.memory_space<vmem>>) attributes {dimension_semantics = [#tpu.dimension_semantics<parallel>], iteration_bounds = array<i64: 1>, scalar_prefetch = 0 : i64, scratch_operands = 0 : i64, tpu.core_type = #tpu.core_type<tc>, window_params = [{transform_indices = @transform_0, window_bounds = array<i64: 24, 1>}, {pipeline_mode = #tpu.pipeline_mode<synchronous>, transform_indices = @transform_1, window_bounds = array<i64: 64, 128>}, {pipeline_mode = #tpu.pipeline_mode<synchronous>, transform_indices = @transform_2, window_bounds = array<i64: 1, 128>}, {pipeline_mode = #tpu.pipeline_mode<synchronous>, transform_indices = @transform_3, window_bounds = array<i64: 1, 128>}, {transform_indices = @transform_4, window_bounds = array<i64: 24, 128>}]} {
    %c0 = arith.constant 0 : index
    %c0_0 = arith.constant 0 : index
    %0 = vector.load %arg1[%c0, %c0_0] : memref<24x1xi32, #tpu.memory_space<vmem>>, vector<24x1xi32>
    %1 = tpu.iota {dimensions = array<i32: 1>} : vector<24x64xi32>
    %2 = vector.broadcast %0 : vector<24x1xi32> to vector<24x64xi32>
    %3 = arith.cmpi eq, %1, %2 : vector<24x64xi32>
    %4 = arith.extui %3 : vector<24x64xi1> to vector<24x64xi32>
    %5 = arith.sitofp %4 : vector<24x64xi32> to vector<24x64xf32>
    %c0_1 = arith.constant 0 : index
    %c0_2 = arith.constant 0 : index
    %6 = vector.load %arg2[%c0_1, %c0_2] : memref<64x128xf32, #tpu.memory_space<vmem>>, vector<64x128xf32>
    %cst = arith.constant dense<0.000000e+00> : vector<24x128xf32>
    %7 = tpu.matmul %5, %6, %cst {dimension_numbers = #tpu.dot_dimension_numbers<[1], [0], [0], [1], [0, 0, 1, 1], [], []>} : vector<24x64xf32>, vector<64x128xf32>, vector<24x128xf32> -> vector<24x128xf32>
    %c0_3 = arith.constant 0 : index
    %c0_4 = arith.constant 0 : index
    %8 = vector.load %arg5[%c0_3, %c0_4] : memref<24x128xf32, #tpu.memory_space<vmem>>, vector<24x128xf32>
    tpu.vector_store %arg5[%c0_3, %c0_4], %7 {strides = array<i32>} : memref<24x128xf32, #tpu.memory_space<vmem>>, vector<24x128xf32>,
    return
  }
  func.func @transform_0(%arg0: i32) -> (i32, i32) {
    %c0_i32 = arith.constant 0 : i32
    %c0_i32_0 = arith.constant 0 : i32
    return %arg0, %c0_i32 : i32, i32
  }
  func.func @transform_1(%arg0: i32) -> (i32, i32) {
    %c0_i32 = arith.constant 0 : i32
    %c0_i32_0 = arith.constant 0 : i32
    %c0_i32_1 = arith.constant 0 : i32
    return %c0_i32, %c0_i32_0 : i32, i32
  }
  func.func @transform_2(%arg0: i32) -> (i32, i32) {
    %c0_i32 = arith.constant 0 : i32
    %c0_i32_0 = arith.constant 0 : i32
    %c0_i32_1 = arith.constant 0 : i32
    return %c0_i32, %c0_i32_0 : i32, i32
  }
  func.func @transform_3(%arg0: i32) -> (i32, i32) {
    %c0_i32 = arith.constant 0 : i32
    %c0_i32_0 = arith.constant 0 : i32
    %c0_i32_1 = arith.constant 0 : i32
    return %c0_i32, %c0_i32_0 : i32, i32
  }
  func.func @transform_4(%arg0: i32) -> (i32, i32) {
    %c0_i32 = arith.constant 0 : i32
    %c0_i32_0 = arith.constant 0 : i32
    return %arg0, %c0_i32 : i32, i32
  }
}

</mosaic_0001>

<llo_original>
// kernel: tpu_custom_call.1
$region0: #{tpu_custom_call.1}
  #allocation0 [shape = 'u32[]', space=smem, size = 0x4, offset = 0x4, fixed_abs, tag = 'smem constant byte address 0x4 - core index']
  #allocation1 [shape = 'u32[144,128]{1,0:T(1,128)}', space=vmem, size = 0x12000, scoped, tag = 'internal scratch']
  %s0 = inlined_call_operand.vmem [shape: s32[24,1], index: 0, kind: input, shape index: {}]
  %s1 = inlined_call_operand.hbm [shape: f32[64,128], index: 1, kind: input, shape index: {}]
  %s2 = inlined_call_operand.vmem [shape: f32[1,128], index: 2, kind: input, shape index: {}]
  %s3 = inlined_call_operand.vmem [shape: f32[1,128], index: 3, kind: input, shape index: {}]
  %s4 = inlined_call_operand.hbm [shape: f32[24,128], index: 4, kind: output, shape index: {}]
  %s5 = sld [smem:[#allocation0]]
  $region30: #{tpu_custom_call.1} parent=0
    _
  %s7 = ssub.s32 1, %s5
  %s8 = scalar_select 0, %s7, %s5
  $region1: #{tpu_custom_call.1} parent=0
    #allocation2 [shape = 'u8[32768]{0}', space=vmem, size = 0x8000, scoped, tag = 'input window, operand 1, single buffered']
    #allocation3 [shape = 's32[1]{0}', space=sflag, size = 0x4, scoped, tag = 'scoped memory for tpu_custom_call.1']
    #allocation4 [shape = 's32[1]{0}', space=sflag, size = 0x4, scoped, tag = 'scoped memory for tpu_custom_call.1']
    #allocation5 [shape = 'u8[12288]{0}', space=vmem, size = 0x3000, scoped, tag = 'output window, operand 0, single buffered']
    %9 = vsyncpa [#allocation3], 0
    %10 = vsyncpa [#allocation4], 0
    // Predicated region
    $region2: #{tpu_custom_call.1} parent=1 // pred_check
      _
    $region3: #{tpu_custom_call.1} parent=1 // pred_check_branch
      %12 = sbr.rel (0) target = $region5
    $region4: #{tpu_custom_call.1} parent=1 // pred_region
      _
    $region5: #{tpu_custom_call.1} parent=1 // pred_fallthru
      _
    // Predicated region
    $region6: #{tpu_custom_call.1} parent=1 // pred_check
      _
    $region7: #{tpu_custom_call.1} parent=1 // pred_check_branch
      %14 = sbr.rel (0) target = $region9
    $region8: #{tpu_custom_call.1} parent=1 // pred_region
      %s16 = ssub.s32 1024, 1024
      %17 = vsyncadd [#allocation3], %s16
      %s18 = sshll.u32 [#allocation2], 4
      %s19 = int_to_ptr.vmem [resolvable:$true] %s18
      %24 = dma.hbm_to_vmem [thread:$0]  %s1, 1024, %s19, [#allocation3], 128, 128, 8
    $region9: #{tpu_custom_call.1} parent=1 // pred_fallthru
      _
    // Predicated region
    $region10: #{tpu_custom_call.1} parent=1 // pred_check
      _
    $region11: #{tpu_custom_call.1} parent=1 // pred_check_branch
      %26 = sbr.rel (0) target = $region13
    $region12: #{tpu_custom_call.1} parent=1 // pred_region
      _
    $region13: #{tpu_custom_call.1} parent=1 // pred_fallthru
      _
    // Predicated region
    $region14: #{tpu_custom_call.1} parent=1 // pred_check
      _
    $region15: #{tpu_custom_call.1} parent=1 // pred_check_branch
      %28 = sbr.rel (0) target = $region17
    $region16: #{tpu_custom_call.1} parent=1 // pred_region
      _
    $region17: #{tpu_custom_call.1} parent=1 // pred_fallthru
      _
    // Predicated region
    $region18: #{tpu_custom_call.1} parent=1 // pred_check
      _
    $region19: #{tpu_custom_call.1} parent=1 // pred_check_branch
      %30 = sbr.rel (0) target = $region21
    $region20: #{tpu_custom_call.1} parent=1 // pred_region
      %31 = dma.done [#allocation3], 1024
    $region21: #{tpu_custom_call.1} parent=1 // pred_fallthru
      _
    %v32 = vld [vmem:[%s0] sm:$0xff]
    %v33 = vld [vmem:[%s0 + $0x8] sm:$0xff]
    %v34 = vld [vmem:[%s0 + $0x10] sm:$0xff]
    %v35 = vlaneseq
    %v36 = vand.u32 %v35, 127
    %37 = vset.pattern.permute.xlu0 0
    %38 = vperm.xlu0 %37, %v32
    %v39 = vpop.permute.xlu0 %38
    %40 = vset.pattern.permute.xlu0 0
    %41 = vperm.xlu0 %40, %v33
    %v42 = vpop.permute.xlu0 %41
    %43 = vset.pattern.permute.xlu0 0
    %44 = vperm.xlu0 %43, %v34
    %v45 = vpop.permute.xlu0 %44
    %vm46 = vcmp.eq.s32.totalorder %v36, %v39
    %vm47 = vcmp.eq.s32.totalorder %v36, %v42
    %vm48 = vcmp.eq.s32.totalorder %v36, %v45
    %v49 = vsel %vm46, 1, 0
    %v50 = vsel %vm47, 1, 0
    %v51 = vsel %vm48, 1, 0
    %v52 = vcvt.s32.f32 %v49
    %v53 = vcvt.s32.f32 %v50
    %v54 = vcvt.s32.f32 %v51
    %v55 = vld [vmem:[#allocation2] sm:$0xff]
    %v56 = vld [vmem:[#allocation2 + $0x8] sm:$0xff]
    %v57 = vld [vmem:[#allocation2 + $0x10] sm:$0xff]
    %v58 = vld [vmem:[#allocation2 + $0x18] sm:$0xff]
    %v59 = vld [vmem:[#allocation2 + $0x20] sm:$0xff]
    %v60 = vld [vmem:[#allocation2 + $0x28] sm:$0xff]
    %v61 = vld [vmem:[#allocation2 + $0x30] sm:$0xff]
    %v62 = vld [vmem:[#allocation2 + $0x38] sm:$0xff]
    %vm63 = vcmask 523264
    %v65 = vsel %vm63, %v52, 0
    %v68 = vsel %vm63, %v53, 0
    %v71 = vsel %vm63, %v54, 0
    %73 = vmatprep.subr.mxu0 0.0
    %74 = vmatpush1.msra.mxu0 %v55
    %75 = vmatprep.subr.mxu0 0.0
    %76 = vmatpush1.msra.mxu0 %v56
    %77 = vmatprep.subr.mxu0 0.0
    %78 = vmatpush1.msra.mxu0 %v57
    %79 = vmatprep.subr.mxu0 0.0
    %80 = vmatpush1.msra.mxu0 %v58
    %81 = vmatprep.subr.mxu0 0.0
    %82 = vmatpush1.msra.mxu0 %v59
    %83 = vmatprep.subr.mxu0 0.0
    %84 = vmatpush1.msra.mxu0 %v60
    %85 = vmatprep.subr.mxu0 0.0
    %86 = vmatpush1.msra.mxu0 %v61
    %87 = vmatprep.subr.mxu0 0.0
    %88 = vmatpush1.msra.mxu0 %v62
    %89 = vmatprep.subr.mxu0 0.0
    %90 = vmatpush1.msra.mxu0 0.0
    %91 = vmatprep.subr.mxu0 0.0
    %92 = vmatpush1.msra.mxu0 0.0
    %93 = vmatprep.subr.mxu0 0.0
    %94 = vmatpush1.msra.mxu0 0.0
    %95 = vmatprep.subr.mxu0 0.0
    %96 = vmatpush1.msra.mxu0 0.0
    %97 = vmatprep.subr.mxu0 0.0
    %98 = vmatpush1.msra.mxu0 0.0
    %99 = vmatprep.subr.mxu0 0.0
    %100 = vmatpush1.msra.mxu0 0.0
    %101 = vmatprep.subr.mxu0 0.0
    %102 = vmatpush1.msra.mxu0 0.0
    %103 = vmatprep.subr.mxu0 0.0
    %104 = vmatpush1.msra.mxu0 0.0
    %105 = vmatprep.subr.mxu0 0.0
    %106 = vmatpush1.msra.mxu0 0.0
    %107 = vmatprep.subr.mxu0 0.0
    %108 = vmatpush1.msra.mxu0 0.0
    %109 = vmatprep.subr.mxu0 0.0
    %110 = vmatpush1.msra.mxu0 0.0
    %111 = vmatprep.subr.mxu0 0.0
    %112 = vmatpush1.msra.mxu0 0.0
    %113 = vmatprep.subr.mxu0 0.0
    %114 = vmatpush1.msra.mxu0 0.0
    %115 = vmatprep.subr.mxu0 0.0
    %116 = vmatpush1.msra.mxu0 0.0
    %117 = vmatprep.subr.mxu0 0.0
    %118 = vmatpush1.msra.mxu0 0.0
    %119 = vmatprep.subr.mxu0 0.0
    %120 = vmatpush1.msra.mxu0 0.0
    %121 = vmatprep.subr.mxu0 0.0
    %122 = vmatpush1.msra.mxu0 0.0
    %123 = vmatprep.subr.mxu0 0.0
    %124 = vmatpush1.msra.mxu0 0.0
    %125 = vmatprep.subr.mxu0 0.0
    %126 = vmatpush1.msra.mxu0 0.0
    %127 = vmatprep.subr.mxu0 0.0
    %128 = vmatpush1.msra.mxu0 0.0
    %129 = vmatprep.subr.mxu0 0.0
    %130 = vmatpush1.msra.mxu0 0.0
    %131 = vmatprep.subr.mxu0 0.0
    %132 = vmatpush1.msra.mxu0 0.0
    %133 = vmatprep.subr.mxu0 0.0
    %134 = vmatpush1.msra.mxu0 0.0
    %135 = vmatprep.subr.mxu0 0.0
    %136 = vmatpush1.msra.mxu0 0.0
    %137 = vmatprep.mubr.f32.mxu0 0.0
    %138 = vmatmul.mubr.f32.gmra.mrb[0].mxu0 %v65
    %v139 = vpop.f32.mrb[0].mxu0
    %v140 = vadd.f32 0.0, %v139
    %v141 = vpop.f32.mrb[0].mxu0
    %142 = vmatprep.mubr.f32.mxu0 0.0
    %143 = vmatmul.mubr.f32.gmra.mrb[0].mxu0 %v68
    %v144 = vpop.f32.mrb[0].mxu0
    %v145 = vadd.f32 0.0, %v144
    %v146 = vpop.f32.mrb[0].mxu0
    %147 = vmatprep.mubr.f32.mxu0 0.0
    %148 = vmatmul.mubr.f32.gmra.mrb[0].mxu0 %v71
    %v149 = vpop.f32.mrb[0].mxu0
    %v150 = vadd.f32 0.0, %v149
    %v151 = vpop.f32.mrb[0].mxu0
    %152 = vdwg.mxu0
    %153 = vst [vmem:[#allocation5] sm:$0xff] %v140
    %154 = vst [vmem:[#allocation5 + $0x8] sm:$0xff] %v145
    %155 = vst [vmem:[#allocation5 + $0x10] sm:$0xff] %v150
    // Predicated region
    $region22: #{tpu_custom_call.1} parent=1 // pred_check
      _
    $region23: #{tpu_custom_call.1} parent=1 // pred_check_branch
      %157 = sbr.rel (0) target = $region25
    $region24: #{tpu_custom_call.1} parent=1 // pred_region
      %s159 = ssub.s32 384, 384
      %160 = vsyncadd [#allocation4], %s159
      %s161 = sshll.u32 [#allocation5], 4
      %s162 = int_to_ptr.vmem [resolvable:$true] %s161
      %167 = dma.vmem_to_hbm [thread:$0]  %s162, 384, %s4, [#allocation4], 128, 128, 8
    $region25: #{tpu_custom_call.1} parent=1 // pred_fallthru
      _
    // Predicated region
    $region26: #{tpu_custom_call.1} parent=1 // pred_check
      _
    $region27: #{tpu_custom_call.1} parent=1 // pred_check_branch
      %169 = sbr.rel (0) target = $region29
    $region28: #{tpu_custom_call.1} parent=1 // pred_region
      %170 = dma.done [#allocation4], 384
    $region29: #{tpu_custom_call.1} parent=1 // pred_fallthru
      _
    %171 = vsyncpa [#allocation3], 1
    %172 = vsyncpa [#allocation4], 1

</llo_original>
